<compile_context>
chip_gen: v7x
topology: tpu7x:2x2x1
jax: 0.10.0
libtpu: 0.0.40
codegen_flags: <defaults>
</compile_context>

<pallas_src>
import math

import jax
import jax.numpy as jnp
from jax.experimental import pallas as pl
from jax.experimental.pallas import tpu as pltpu

_LANES = 128           # lane width: last dim of every block (full vreg lane count)
_MAX_TILE_ROWS = 4096  # 4096 x 128 f32 = 2 MiB/block -> 2 arrays x 2 buffers = 8 MiB VMEM


def _double_kernel(x_ref, o_ref):
    # Elementwise hot path: out = 2 * x (computed as x + x, exact for all float dtypes).
    x = x_ref[...]
    o_ref[...] = x + x


def identity_self_attention(hidden_states, past_key_value=None,
                            cache_position=None, layer_idx=0,
                            *, min_pallas_elements=1 << 15):
    """Pallas implementation of IdentitySelfAttention.forward.

    Returns (2 * hidden_states, None, past_key_value), matching the PyTorch module.
    """
    del cache_position, layer_idx  # accepted for API parity; unused on the hot path
    shape = hidden_states.shape
    dtype = hidden_states.dtype
    n = math.prod(shape)

    if past_key_value is not None:
        # TODO(synk): PyTorch Cache.update() is a stateful framework object; a real
        # KV-cache integration would zero-fill the existing cache pages in place via a
        # Pallas writeback kernel (input_output_aliases on the donated cache buffers),
        # not by materializing fresh zero tensors here.
        pass

    # Fallback path: (a) tiny inputs where the fixed Pallas launch cost dominates, or
    # (b) sizes that don't flatten to full 128-wide lanes (padding them in the wrapper
    # would cost a full extra HBM copy; fused XLA is already at the HBM roofline).
    if n == 0 or n < min_pallas_elements or n % _LANES != 0:
        return (hidden_states + hidden_states, None, past_key_value)

    # Lane-dense row tiling: flatten to (rows, 128). Reshape of a contiguous array is a
    # bitcast (no HBM copy), so the only traffic is the kernel's own 1 read + 1 write.
    rows = n // _LANES
    x2d = hidden_states.reshape(rows, _LANES)

    # Single full-array block (always a legal block shape) for small inputs; otherwise
    # fixed 4096-row blocks with a pl.cdiv grid (boundary block is masked by Pallas).
    tile_rows = rows if rows <= _MAX_TILE_ROWS else _MAX_TILE_ROWS
    grid = (pl.cdiv(rows, tile_rows),)
    blk = pl.BlockSpec((tile_rows, _LANES), lambda i: (i, 0))

    out2d = pl.pallas_call(
        _double_kernel,
        grid=grid,
        in_specs=[blk],
        out_specs=blk,
        out_shape=jax.ShapeDtypeStruct((rows, _LANES), dtype),
        compiler_params=pltpu.CompilerParams(
            dimension_semantics=("parallel",),       # megacore sharding on v7x
            vmem_limit_bytes=32 * 1024 * 1024,       # safe on v5e/v6e/v7x; 8 MiB actually used
        ),
    )(x2d)

    return (out2d.reshape(shape), None, past_key_value)


if __name__ == "__main__":
    key = jax.random.PRNGKey(0)
    B, S, D = 2, 8, 32
    hidden_states = jax.random.normal(key, (B, S, D), dtype=jnp.float32)
    cache_position = jnp.arange(S, dtype=jnp.int32)

    # Force the Pallas path even at this tiny test shape (production calls below the
    # threshold take the fused-XLA fast path instead).
    out_hidden, attn_weights, past_kv = identity_self_attention(
        hidden_states, past_key_value=None, cache_position=cache_position,
        layer_idx=0, min_pallas_elements=0)
    out_hidden = jax.block_until_ready(out_hidden)

    expected = 2.0 * hidden_states
    assert attn_weights is None
    assert past_kv is None
    assert out_hidden.shape == hidden_states.shape
    assert out_hidden.dtype == hidden_states.dtype
    assert jnp.array_equal(out_hidden, expected)

    print("KERNEL_OK")
</pallas_src>

<mosaic_0001>
module attributes {stable_mosaic.version = 11 : i64} {
  func.func @_double_kernel(%arg0: i32, %arg1: memref<4x128xf32, #tpu.memory_space<vmem>>, %arg2: memref<4x128xf32, #tpu.memory_space<vmem>>) attributes {dimension_semantics = [#tpu.dimension_semantics<parallel>], iteration_bounds = array<i64: 1>, scalar_prefetch = 0 : i64, scratch_operands = 0 : i64, tpu.core_type = #tpu.core_type<tc>, window_params = [{transform_indices = @transform_0, window_bounds = array<i64: 4, 128>}, {transform_indices = @transform_1, window_bounds = array<i64: 4, 128>}]} {
    %c0 = arith.constant 0 : index
    %c0_0 = arith.constant 0 : index
    %0 = vector.load %arg1[%c0, %c0_0] : memref<4x128xf32, #tpu.memory_space<vmem>>, vector<4x128xf32>
    %1 = arith.addf %0, %0 : vector<4x128xf32>
    %c0_1 = arith.constant 0 : index
    %c0_2 = arith.constant 0 : index
    %2 = vector.load %arg2[%c0_1, %c0_2] : memref<4x128xf32, #tpu.memory_space<vmem>>, vector<4x128xf32>
    tpu.vector_store %arg2[%c0_1, %c0_2], %1 {strides = array<i32>} : memref<4x128xf32, #tpu.memory_space<vmem>>, vector<4x128xf32>,
    return
  }
  func.func @transform_0(%arg0: i32) -> (i32, i32) {
    %c0_i32 = arith.constant 0 : i32
    %c0_i32_0 = arith.constant 0 : i32
    return %arg0, %c0_i32 : i32, i32
  }
  func.func @transform_1(%arg0: i32) -> (i32, i32) {
    %c0_i32 = arith.constant 0 : i32
    %c0_i32_0 = arith.constant 0 : i32
    return %arg0, %c0_i32 : i32, i32
  }
}

</mosaic_0001>

<llo_original>
// kernel: tpu_custom_call.1
$region0: #{tpu_custom_call.1}
  #allocation0 [shape = 'u32[]', space=smem, size = 0x4, offset = 0x4, fixed_abs, tag = 'smem constant byte address 0x4 - core index']
  #allocation1 [shape = 'u32[144,128]{1,0:T(1,128)}', space=vmem, size = 0x12000, scoped, tag = 'internal scratch']
  %s0 = inlined_call_operand.hbm [shape: f32[4,128], index: 0, kind: input, shape index: {}]
  %s1 = inlined_call_operand.hbm [shape: f32[4,128], index: 1, kind: output, shape index: {}]
  %s2 = sld [smem:[#allocation0]]
  $region18: #{tpu_custom_call.1} parent=0
    _
  %s4 = ssub.s32 1, %s2
  %s5 = scalar_select 0, %s4, %s2
  $region1: #{tpu_custom_call.1} parent=0
    #allocation2 [shape = 'u8[2048]{0}', space=vmem, size = 0x800, scoped, tag = 'input window, operand 0, single buffered']
    #allocation3 [shape = 's32[1]{0}', space=sflag, size = 0x4, scoped, tag = 'scoped memory for tpu_custom_call.1']
    #allocation4 [shape = 's32[1]{0}', space=sflag, size = 0x4, scoped, tag = 'scoped memory for tpu_custom_call.1']
    #allocation5 [shape = 'u8[2048]{0}', space=vmem, size = 0x800, scoped, tag = 'output window, operand 0, single buffered']
    %6 = vsyncpa [#allocation3], 0
    %7 = vsyncpa [#allocation4], 0
    // Predicated region
    $region2: #{tpu_custom_call.1} parent=1 // pred_check
      _
    $region3: #{tpu_custom_call.1} parent=1 // pred_check_branch
      %9 = sbr.rel (0) target = $region5
    $region4: #{tpu_custom_call.1} parent=1 // pred_region
      %s11 = ssub.s32 64, 64
      %12 = vsyncadd [#allocation3], %s11
      %s14 = sshll.u32 [#allocation2], 4
      %s15 = int_to_ptr.vmem [resolvable:$true] %s14
      %17 = dma.hbm_to_vmem [thread:$0]  %s0, 64, %s15, [#allocation3]
    $region5: #{tpu_custom_call.1} parent=1 // pred_fallthru
      _
    // Predicated region
    $region6: #{tpu_custom_call.1} parent=1 // pred_check
      _
    $region7: #{tpu_custom_call.1} parent=1 // pred_check_branch
      %19 = sbr.rel (0) target = $region9
    $region8: #{tpu_custom_call.1} parent=1 // pred_region
      %20 = dma.done [#allocation3], 64
    $region9: #{tpu_custom_call.1} parent=1 // pred_fallthru
      _
    %v21 = vld [vmem:[#allocation2] sm:$0xf]
    %v22 = vadd.f32 %v21, %v21
    %23 = vst [vmem:[#allocation5] sm:$0xf] %v22
    // Predicated region
    $region10: #{tpu_custom_call.1} parent=1 // pred_check
      _
    $region11: #{tpu_custom_call.1} parent=1 // pred_check_branch
      %25 = sbr.rel (0) target = $region13
    $region12: #{tpu_custom_call.1} parent=1 // pred_region
      %s27 = ssub.s32 64, 64
      %28 = vsyncadd [#allocation4], %s27
      %s30 = sshll.u32 [#allocation5], 4
      %s31 = int_to_ptr.vmem [resolvable:$true] %s30
      %33 = dma.vmem_to_hbm [thread:$0]  %s31, 64, %s1, [#allocation4]
    $region13: #{tpu_custom_call.1} parent=1 // pred_fallthru
      _
    // Predicated region
    $region14: #{tpu_custom_call.1} parent=1 // pred_check
      _
    $region15: #{tpu_custom_call.1} parent=1 // pred_check_branch
      %35 = sbr.rel (0) target = $region17
    $region16: #{tpu_custom_call.1} parent=1 // pred_region
      %36 = dma.done [#allocation4], 64
    $region17: #{tpu_custom_call.1} parent=1 // pred_fallthru
      _
    %37 = vsyncpa [#allocation3], 1
    %38 = vsyncpa [#allocation4], 1

</llo_original>
